<compile_context>
chip_gen: v5e
topology: v5e:2x2
jax: 0.10.0
libtpu: 0.0.40
codegen_flags: <defaults>
</compile_context>

<pallas_src>
import jax
import jax.numpy as jnp
from jax.experimental import pallas as pl
from jax.experimental.pallas import tpu as pltpu


def _embed_kernel(patch_ref, w_ref, pos_ref, out_ref):
    # patch_ref: (tm, Cpp_pad)  bf16  -- one batch element, one row tile (cls row = zeros)
    # w_ref    : (Cpp_pad, E)   bf16  -- full flattened conv weight (grid-resident)
    # pos_ref  : (tm, E)        f32   -- position table with cls / conv-bias folded in
    # out_ref  : (tm, E)        f32
    acc = jnp.dot(patch_ref[...], w_ref[...], preferred_element_type=jnp.float32)
    out_ref[...] = (acc + pos_ref[...]).astype(out_ref.dtype)


def blip2_vision_embeddings(pixel_values, conv_weight, conv_bias,
                            class_embedding, position_embedding, patch_size):
    """pixel_values: (B, 3, H, W) f32
       conv_weight : (E, 3, P, P) (PyTorch Conv2d layout)
       conv_bias   : (E,)
       class_embedding   : (1, 1, E)
       position_embedding: (1, num_patches + 1, E)
    Returns (B, num_patches + 1, E) float32."""
    B, C, H, W = pixel_values.shape
    P = patch_size
    E = conv_weight.shape[0]
    nh, nw = H // P, W // P
    num_patches = nh * nw
    num_positions = num_patches + 1
    Cpp = C * P * P
    Cpp_pad = pl.cdiv(Cpp, 128) * 128

    # Row tiling: 2 "parallel" M tiles keep both v7x TensorCores busy at B=1;
    # Pallas masks the ragged tail block.  Tiny configs use one full-M block.
    if num_positions >= 16:
        tm = 8 * pl.cdiv(pl.cdiv(num_positions, 2), 8)
    else:
        tm = num_positions
    grid_m = pl.cdiv(num_positions, tm)

    # --- XLA glue: bf16 cast BEFORE the transpose; one pad that both prepends
    # the zero cls row and pads the contraction dim to Cpp_pad. ---
    x = pixel_values.astype(jnp.bfloat16).reshape(B, C, nh, P, nw, P)
    x = jnp.transpose(x, (0, 2, 4, 1, 3, 5))                  # (B, nh, nw, C, P, P)
    patches = x.reshape(B, num_patches, Cpp)
    patches = jnp.pad(patches, ((0, 0), (1, 0), (0, Cpp_pad - Cpp)))  # (B, num_positions, Cpp_pad)

    w_flat = conv_weight.reshape(E, Cpp).T.astype(jnp.bfloat16)        # (Cpp, E)
    if Cpp_pad != Cpp:
        w_flat = jnp.pad(w_flat, ((0, Cpp_pad - Cpp), (0, 0)))

    # Position table: row 0 = cls + pos[0] (no conv bias); rows 1.. = pos + bias.
    cls_row = class_embedding.reshape(1, E) + position_embedding[0, 0:1, :]
    patch_rows = position_embedding[0, 1:, :] + conv_bias[None, :]
    pos_table = jnp.concatenate([cls_row, patch_rows], axis=0).astype(jnp.float32)

    # Explicit VMEM budget: double-buffered blocks x2 headroom, clamped to
    # [32 MiB, 64 MiB] so it is safe on v5e defaults and v7x physical VMEM.
    blk_bytes = 2 * (tm * Cpp_pad * 2 + Cpp_pad * E * 2 + tm * E * 4 + tm * E * 4)
    vmem_limit = int(min(64 * 1024 * 1024, max(32 * 1024 * 1024, 2 * blk_bytes)))

    out = pl.pallas_call(
        _embed_kernel,
        out_shape=jax.ShapeDtypeStruct((B, num_positions, E), jnp.float32),
        grid_spec=pltpu.PrefetchScalarGridSpec(
            num_scalar_prefetch=0,
            grid=(grid_m, B),          # batch innermost -> w / pos stay resident
            in_specs=[
                pl.BlockSpec((None, tm, Cpp_pad), lambda m, b: (b, m, 0)),
                pl.BlockSpec((Cpp_pad, E), lambda m, b: (0, 0)),
                pl.BlockSpec((tm, E), lambda m, b: (m, 0)),
            ],
            out_specs=pl.BlockSpec((None, tm, E), lambda m, b: (b, m, 0)),
        ),
        compiler_params=pltpu.CompilerParams(
            dimension_semantics=("parallel", "parallel"),
            vmem_limit_bytes=vmem_limit),
    )(patches, w_flat, pos_table)
    return out


def _reference(pixel_values, conv_weight, conv_bias, class_embedding,
               position_embedding, patch_size):
    """Pure-JAX f32 reference mirroring the PyTorch forward."""
    B, C, H, W = pixel_values.shape
    P = patch_size
    E = conv_weight.shape[0]
    patch_embeds = jax.lax.conv_general_dilated(
        pixel_values, conv_weight, window_strides=(P, P), padding="VALID",
        dimension_numbers=("NCHW", "OIHW", "NCHW"))
    patch_embeds = patch_embeds + conv_bias.reshape(1, E, 1, 1)
    patch_embeds = patch_embeds.reshape(B, E, -1).transpose(0, 2, 1)   # (B, N, E)
    class_embeds = jnp.broadcast_to(class_embedding, (B, 1, E))
    embeddings = jnp.concatenate([class_embeds, patch_embeds], axis=1)
    embeddings = embeddings + position_embedding[:, : embeddings.shape[1], :]
    return embeddings


if __name__ == "__main__":
    # Small, self-consistent config: image 16x16, patch 4 -> 16 patches, hidden 32.
    image_size, patch_size, embed_dim, batch = 16, 4, 32, 2
    num_patches = (image_size // patch_size) ** 2
    num_positions = num_patches + 1

    key = jax.random.PRNGKey(0)
    k1, k2, k3, k4, k5 = jax.random.split(key, 5)
    pixel_values = jax.random.normal(k1, (batch, 3, image_size, image_size),
                                     dtype=jnp.float32)
    conv_weight = jax.random.normal(
        k2, (embed_dim, 3, patch_size, patch_size), dtype=jnp.float32) * 0.02
    conv_bias = jax.random.normal(k3, (embed_dim,), dtype=jnp.float32) * 0.02
    class_embedding = jax.random.normal(k4, (1, 1, embed_dim), dtype=jnp.float32)
    position_embedding = jax.random.normal(
        k5, (1, num_positions, embed_dim), dtype=jnp.float32)

    out = blip2_vision_embeddings(pixel_values, conv_weight, conv_bias,
                                  class_embedding, position_embedding,
                                  patch_size)
    out = jax.block_until_ready(out)

    ref = _reference(pixel_values, conv_weight, conv_bias, class_embedding,
                     position_embedding, patch_size)
    assert out.shape == (batch, num_positions, embed_dim)
    # bf16 matmul inputs with f32 accumulation: slightly looser tolerance.
    assert jnp.allclose(out, ref, atol=2e-2, rtol=2e-2)

    print("KERNEL_OK")
</pallas_src>

<mosaic_0001>
module attributes {stable_mosaic.version = 11 : i64} {
  func.func @_embed_kernel(%arg0: i32, %arg1: i32, %arg2: memref<1x16x128xbf16, #tpu.memory_space<vmem>>, %arg3: memref<128x32xbf16, #tpu.memory_space<vmem>>, %arg4: memref<16x32xf32, #tpu.memory_space<vmem>>, %arg5: memref<1x16x32xf32, #tpu.memory_space<vmem>>) attributes {dimension_semantics = [#tpu.dimension_semantics<parallel>, #tpu.dimension_semantics<parallel>], iteration_bounds = array<i64: 2, 2>, scalar_prefetch = 0 : i64, scratch_operands = 0 : i64, tpu.core_type = #tpu.core_type<tc>, window_params = [{transform_indices = @transform_0, window_bounds = array<i64: 1, 16, 128>}, {pipeline_mode = #tpu.pipeline_mode<synchronous>, transform_indices = @transform_1, window_bounds = array<i64: 128, 32>}, {transform_indices = @transform_2, window_bounds = array<i64: 16, 32>}, {transform_indices = @transform_3, window_bounds = array<i64: 1, 16, 32>}]} {
    %c0 = arith.constant 0 : index
    %c0_0 = arith.constant 0 : index
    %c0_1 = arith.constant 0 : index
    %0 = vector.load %arg2[%c0, %c0_0, %c0_1] : memref<1x16x128xbf16, #tpu.memory_space<vmem>>, vector<1x16x128xbf16>
    %1 = vector.shape_cast %0 : vector<1x16x128xbf16> to vector<16x128xbf16>
    %c0_2 = arith.constant 0 : index
    %c0_3 = arith.constant 0 : index
    %2 = vector.load %arg3[%c0_2, %c0_3] : memref<128x32xbf16, #tpu.memory_space<vmem>>, vector<128x32xbf16>
    %cst = arith.constant dense<0.000000e+00> : vector<16x32xf32>
    %3 = tpu.matmul %1, %2, %cst {dimension_numbers = #tpu.dot_dimension_numbers<[1], [0], [0], [1], [0, 0, 1, 1], [], []>} : vector<16x128xbf16>, vector<128x32xbf16>, vector<16x32xf32> -> vector<16x32xf32>
    %c0_4 = arith.constant 0 : index
    %c0_5 = arith.constant 0 : index
    %4 = vector.load %arg4[%c0_4, %c0_5] : memref<16x32xf32, #tpu.memory_space<vmem>>, vector<16x32xf32>
    %5 = arith.addf %3, %4 : vector<16x32xf32>
    %c0_6 = arith.constant 0 : index
    %c0_7 = arith.constant 0 : index
    %c0_8 = arith.constant 0 : index
    %6 = vector.load %arg5[%c0_6, %c0_7, %c0_8] : memref<1x16x32xf32, #tpu.memory_space<vmem>>, vector<1x16x32xf32>
    %7 = vector.shape_cast %6 : vector<1x16x32xf32> to vector<16x32xf32>
    %8 = vector.shape_cast %5 : vector<16x32xf32> to vector<1x16x32xf32>
    tpu.vector_store %arg5[%c0_6, %c0_7, %c0_8], %8 {strides = array<i32>} : memref<1x16x32xf32, #tpu.memory_space<vmem>>, vector<1x16x32xf32>,
    return
  }
  func.func @transform_0(%arg0: i32, %arg1: i32) -> (i32, i32, i32) {
    %c0_i32 = arith.constant 0 : i32
    %c0_i32_0 = arith.constant 0 : i32
    return %arg1, %arg0, %c0_i32 : i32, i32, i32
  }
  func.func @transform_1(%arg0: i32, %arg1: i32) -> (i32, i32) {
    %c0_i32 = arith.constant 0 : i32
    %c0_i32_0 = arith.constant 0 : i32
    %c0_i32_1 = arith.constant 0 : i32
    return %c0_i32, %c0_i32_0 : i32, i32
  }
  func.func @transform_2(%arg0: i32, %arg1: i32) -> (i32, i32) {
    %c0_i32 = arith.constant 0 : i32
    %c0_i32_0 = arith.constant 0 : i32
    return %arg0, %c0_i32 : i32, i32
  }
  func.func @transform_3(%arg0: i32, %arg1: i32) -> (i32, i32, i32) {
    %c0_i32 = arith.constant 0 : i32
    %c0_i32_0 = arith.constant 0 : i32
    return %arg1, %arg0, %c0_i32 : i32, i32, i32
  }
}

</mosaic_0001>

<llo_original>
// kernel: tpu_custom_call.1
$region0: #{tpu_custom_call.1}
  #allocation0 [shape = 'u32[]', space=smem, size = 0x4, offset = 0x4, fixed_abs, tag = 'smem constant byte address 0x4 - core index']
  #allocation1 [shape = 'u32[72,128]{1,0:T(1,128)}', space=vmem, size = 0x9000, scoped, tag = 'internal scratch']
  %s0 = inlined_call_operand.vmem [shape: bf16[2,17,128], index: 0, kind: input, shape index: {}]
  %s1 = inlined_call_operand.vmem [shape: bf16[128,32], index: 1, kind: input, shape index: {}]
  %s2 = inlined_call_operand.vmem [shape: f32[17,32], index: 2, kind: input, shape index: {}]
  %s3 = inlined_call_operand.vmem [shape: f32[2,17,32], index: 3, kind: output, shape index: {}]
  %s4 = sld [smem:[#allocation0]]
  $region93: #{tpu_custom_call.1} parent=0
    _
  %s6 = ssub.s32 1, %s4
  %s7 = scalar_select 0, %s6, %s4
  $region1: #{tpu_custom_call.1} parent=0
    #allocation2 [shape = 'u8[16384]{0}', space=vmem, size = 0x4000, scoped, tag = 'output window, operand 0']
    loop: start=0, step=1, limit=6
    $region2: #{tpu_custom_call.1} parent=1 // loop_pre_header
      _
    $region3: #{tpu_custom_call.1} parent=1 // loop_header
      %s9 = sphi 0, %s13
      %p10 = scmp.ge.s32.totalorder %s9, 6
      %s16 = sphi 0, %s28
      %s17 = sphi 0, %s24
      %s18 = sphi 0, %s16
      %s19 = sphi 0, %s17
      %s20 = sphi 0, %s18
      %s21 = sphi 0, %s19
      %s33 = sphi 0, %s35
      %s36 = sphi 0, %s33
      %s37 = sphi 0, %s36
      %s53 = sphi 0, %s37
      %s57 = sphi 0, %s57
      %s59 = sphi 0, %s57
      %s60 = sphi 0, %s59
      %s74 = sphi 0, %s60
      %s80 = sphi 0, %s82
      %s83 = sphi 0, %s80
      %s84 = sphi 0, %s83
      %s100 = sphi 0, %s84
      %s108 = sphi 0, %s110
      %s111 = sphi 0, %s108
      %s112 = sphi 0, %s111
      %s128 = sphi 0, %s112
    $region4: #{tpu_custom_call.1} parent=1 // loop_header_branch
      %12 = sbr.rel (%p10) target = $region8
    $region5: #{tpu_custom_call.1} parent=1 // loop_body
      %s14 = ssub.s32 %s9, 1
      %s15 = ssub.s32 %s9, 2
      %s22 = sadd.s32 1, %s17
      %p23 = scmp.ge.s32.totalorder %s22, 2
      %s24 = scalar_select %p23, 0, %s22
      %s25 = sadd.s32 1, %s16
      %s26 = scalar_select %p23, %s25, %s16
      %p27 = scmp.ge.s32.totalorder %s26, 2
      %s28 = scalar_select %p27, 0, %s26
      %s29 = ssub.s32 %s17, %s24
      %s30 = ssub.s32 %s16, %s28
      %s31 = sor.u32 %s29, %s30
      %p32 = scmp.eq.s32.totalorder %s31, 0
      %s34 = sadd.s32 %s33, 1
      %s35 = scalar_select %p32, %s33, %s34
      %p38 = pneg %p32
      %p39 = scmp.eq.s32.totalorder %s9, 3
      %p40 = por %p38, %p39
      %p41 = scmp.ne.s32.totalorder %s33, %s36
      %p42 = scmp.eq.s32.totalorder %s9, 0
      %p43 = por %p41, %p42
      %p44 = scmp.ne.s32.totalorder %s33, %s36
      %p45 = scmp.eq.s32.totalorder %s14, 3
      %p46 = por %p44, %p45
      %p47 = scmp.ne.s32.totalorder %s36, %s37
      %p48 = scmp.eq.s32.totalorder %s14, 0
      %p49 = por %p47, %p48
      %p50 = scmp.ne.s32.totalorder %s36, %s37
      %p51 = scmp.eq.s32.totalorder %s15, 3
      %p52 = por %p50, %p51
      %p54 = scmp.ne.s32.totalorder %s37, %s53
      %p55 = scmp.eq.s32.totalorder %s15, 0
      %p56 = por %p54, %p55
      %s58 = sadd.s32 %s57, 1
      %p61 = scmp.eq.s32.totalorder %s9, 3
      %p62 = scmp.ne.s32.totalorder %s57, %s59
      %p63 = scmp.eq.s32.totalorder %s9, 0
      %p64 = por %p62, %p63
      %p65 = scmp.ne.s32.totalorder %s57, %s59
      %p66 = scmp.eq.s32.totalorder %s14, 3
      %p67 = por %p65, %p66
      %p68 = scmp.ne.s32.totalorder %s59, %s60
      %p69 = scmp.eq.s32.totalorder %s14, 0
      %p70 = por %p68, %p69
      %p71 = scmp.ne.s32.totalorder %s59, %s60
      %p72 = scmp.eq.s32.totalorder %s15, 3
      %p73 = por %p71, %p72
      %p75 = scmp.ne.s32.totalorder %s60, %s74
      %p76 = scmp.eq.s32.totalorder %s15, 0
      %p77 = por %p75, %p76
      %s78 = ssub.s32 %s16, %s28
      %p79 = scmp.eq.s32.totalorder %s78, 0
      %s81 = sadd.s32 %s80, 1
      %s82 = scalar_select %p79, %s80, %s81
      %p85 = pneg %p79
      %p86 = scmp.eq.s32.totalorder %s9, 3
      %p87 = por %p85, %p86
      %p88 = scmp.ne.s32.totalorder %s80, %s83
      %p89 = scmp.eq.s32.totalorder %s9, 0
      %p90 = por %p88, %p89
      %p91 = scmp.ne.s32.totalorder %s80, %s83
      %p92 = scmp.eq.s32.totalorder %s14, 3
      %p93 = por %p91, %p92
      %p94 = scmp.ne.s32.totalorder %s83, %s84
      %p95 = scmp.eq.s32.totalorder %s14, 0
      %p96 = por %p94, %p95
      %p97 = scmp.ne.s32.totalorder %s83, %s84
      %p98 = scmp.eq.s32.totalorder %s15, 3
      %p99 = por %p97, %p98
      %p101 = scmp.ne.s32.totalorder %s84, %s100
      %p102 = scmp.eq.s32.totalorder %s15, 0
      %p103 = por %p101, %p102
      %s104 = ssub.s32 %s17, %s24
      %s105 = ssub.s32 %s16, %s28
      %s106 = sor.u32 %s104, %s105
      %p107 = scmp.eq.s32.totalorder %s106, 0
      %s109 = sadd.s32 %s108, 1
      %s110 = scalar_select %p107, %s108, %s109
      %p113 = pneg %p107
      %p114 = scmp.eq.s32.totalorder %s9, 3
      %p115 = por %p113, %p114
      %p116 = scmp.ne.s32.totalorder %s108, %s111
      %p117 = scmp.eq.s32.totalorder %s9, 0
      %p118 = por %p116, %p117
      %p119 = scmp.ne.s32.totalorder %s108, %s111
      %p120 = scmp.eq.s32.totalorder %s14, 3
      %p121 = por %p119, %p120
      %p122 = scmp.ne.s32.totalorder %s111, %s112
      %p123 = scmp.eq.s32.totalorder %s14, 0
      %p124 = por %p122, %p123
      %p125 = scmp.ne.s32.totalorder %s111, %s112
      %p126 = scmp.eq.s32.totalorder %s15, 3
      %p127 = por %p125, %p126
      %p129 = scmp.ne.s32.totalorder %s112, %s128
      %p130 = scmp.eq.s32.totalorder %s15, 0
      %p131 = por %p129, %p130
      %p132 = scmp.le.s32.totalorder 1, %s9
      %p133 = scmp.lt.s32.totalorder %s9, 5
      %p134 = pnand %p132, %p133
      %p135 = pneg %p134
      // Predicated region
      $region9: #{tpu_custom_call.1} parent=5 // pred_check
        _
      $region10: #{tpu_custom_call.1} parent=5 // pred_check_branch
        %137 = sbr.rel (%p134) target = $region12
      $region11: #{tpu_custom_call.1} parent=5 // pred_region
        %s138 = ssub.s32 %s9, 1
        // Predicated region
        $region13: #{tpu_custom_call.1} parent=11 // pred_check
          %p139 = pneg %p70
        $region14: #{tpu_custom_call.1} parent=11 // pred_check_branch
          %141 = sbr.rel (%p139) target = $region16
        $region15: #{tpu_custom_call.1} parent=11 // pred_region
          _
        $region16: #{tpu_custom_call.1} parent=11 // pred_fallthru
          _
      $region12: #{tpu_custom_call.1} parent=5 // pred_fallthru
        _
      %p142 = scmp.lt.s32.totalorder %s9, 4
      // Predicated region
      $region17: #{tpu_custom_call.1} parent=5 // pred_check
        %p143 = pneg %p142
      $region18: #{tpu_custom_call.1} parent=5 // pred_check_branch
        %145 = sbr.rel (%p143) target = $region20
      $region19: #{tpu_custom_call.1} parent=5 // pred_region
        // Predicated region
        $region21: #{tpu_custom_call.1} parent=19 // pred_check
          %p146 = pneg %p43
        $region22: #{tpu_custom_call.1} parent=19 // pred_check_branch
          %148 = sbr.rel (%p146) target = $region24
        $region23: #{tpu_custom_call.1} parent=19 // pred_region
          %s149 = smul.u32 2, %s16
          %s150 = ssub.s32 3, %s149
          %p151 = scmp.lt.s32.totalorder %s150, 2
          %s152 = scalar_select %p151, %s150, 2
          %s153 = smul.u32 4, %s152
          %p154 = scmp.lt.s32.totalorder %s17, 1
          %s155 = scalar_select %p154, %s17, 1
          %p156 = scmp.lt.s32.totalorder %s149, 2
          %s157 = scalar_select %p156, %s149, 2
          %s158 = smul.addr %s155, 3
          %s159 = sadd.s32 %s157, %s158
          %s160 = smul.addr %s159, 4
          %s161 = scalar_lea.vmem %s0, %s160
          %s162 = smul.u32 2, %s16
          %s163 = ssub.s32 3, %s162
          %p164 = scmp.lt.s32.totalorder %s163, 2
          %s165 = scalar_select %p164, %s163, 2
          %s166 = smul.u32 4, %s165
        $region24: #{tpu_custom_call.1} parent=19 // pred_fallthru
          _
        // Predicated region
        $region25: #{tpu_custom_call.1} parent=19 // pred_check
          %p167 = pneg %p90
        $region26: #{tpu_custom_call.1} parent=19 // pred_check_branch
          %169 = sbr.rel (%p167) target = $region28
        $region27: #{tpu_custom_call.1} parent=19 // pred_region
          %s170 = smul.u32 2, %s16
          %s171 = ssub.s32 3, %s170
          %p172 = scmp.lt.s32.totalorder %s171, 2
          %s173 = scalar_select %p172, %s171, 2
          %s174 = smul.u32 8, %s173
          %p175 = scmp.lt.s32.totalorder %s170, 2
          %s176 = scalar_select %p175, %s170, 2
          %s177 = smul.addr %s176, 8
          %s178 = scalar_lea.vmem %s2, %s177
          %s179 = smul.u32 2, %s16
          %s180 = ssub.s32 3, %s179
          %p181 = scmp.lt.s32.totalorder %s180, 2
          %s182 = scalar_select %p181, %s180, 2
          %s183 = smul.u32 8, %s182
        $region28: #{tpu_custom_call.1} parent=19 // pred_fallthru
          _
      $region20: #{tpu_custom_call.1} parent=5 // pred_fallthru
        _
      %p184 = scmp.le.s32.totalorder 1, %s9
      %p185 = scmp.lt.s32.totalorder %s9, 5
      %p186 = pnand %p184, %p185
      %p187 = pneg %p186
      // Predicated region
      $region29: #{tpu_custom_call.1} parent=5 // pred_check
        _
      $region30: #{tpu_custom_call.1} parent=5 // pred_check_branch
        %189 = sbr.rel (%p186) target = $region32
      $region31: #{tpu_custom_call.1} parent=5 // pred_region
        %s190 = ssub.s32 %s9, 1
        %s191 = smul.u32 2, %s18
        %s192 = ssub.s32 3, %s191
        %p193 = scmp.lt.s32.totalorder %s192, 2
        %s194 = scalar_select %p193, %s192, 2
        %s195 = smul.u32 4, %s194
        %p196 = scmp.lt.s32.totalorder %s19, 1
        %s197 = scalar_select %p196, %s19, 1
        %p198 = scmp.lt.s32.totalorder %s191, 2
        %s199 = scalar_select %p198, %s191, 2
        %s200 = smul.addr %s197, 3
        %s201 = sadd.s32 %s199, %s200
        %s202 = smul.addr %s201, 4
        %s203 = scalar_lea.vmem %s0, %s202
        %p204 = pneg %p49
        %p205 = pneg %p46
        %p206 = pneg %p70
        %p207 = pneg %p67
        %s208 = smul.u32 2, %s18
        %s209 = ssub.s32 3, %s208
        %p210 = scmp.lt.s32.totalorder %s209, 2
        %s211 = scalar_select %p210, %s209, 2
        %s212 = smul.u32 8, %s211
        %p213 = scmp.lt.s32.totalorder %s208, 2
        %s214 = scalar_select %p213, %s208, 2
        %s215 = smul.addr %s214, 8
        %s216 = scalar_lea.vmem %s2, %s215
        %p217 = pneg %p96
        %p218 = pneg %p93
        %p219 = pneg %p124
        %p220 = pneg %p121
        %s221 = sand.u32 %s111, 1
        %s222 = sand.u32 %s111, 1
        %s223 = smul.addr %s222, 16
        %s224 = scalar_lea.vmem [#allocation2], %s223
        %s225 = smul.u32 2, %s18
        %s226 = ssub.s32 3, %s225
        %p227 = scmp.lt.s32.totalorder %s226, 2
        %s228 = scalar_select %p227, %s226, 2
        %s229 = smul.u32 4, %s228
        %p230 = scmp.lt.s32.totalorder %s19, 1
        %s231 = scalar_select %p230, %s19, 1
        %p232 = scmp.lt.s32.totalorder %s225, 2
        %s233 = scalar_select %p232, %s225, 2
        %s234 = smul.addr %s231, 3
        %s235 = sadd.s32 %s233, %s234
        %s236 = smul.addr %s235, 4
        %s237 = scalar_lea.vmem %s0, %s236
        %s238 = smul.u32 2, %s18
        %s239 = ssub.s32 3, %s238
        %p240 = scmp.lt.s32.totalorder %s239, 2
        %s241 = scalar_select %p240, %s239, 2
        %s242 = smul.u32 4, %s241
        %s243 = smul.u32 2, %s18
        %s244 = ssub.s32 3, %s243
        %p245 = scmp.lt.s32.totalorder %s244, 2
        %s246 = scalar_select %p245, %s244, 2
        %s247 = smul.u32 8, %s246
        %p248 = scmp.lt.s32.totalorder %s243, 2
        %s249 = scalar_select %p248, %s243, 2
        %s250 = smul.addr %s249, 8
        %s251 = scalar_lea.vmem %s2, %s250
        %s252 = smul.u32 2, %s18
        %s253 = ssub.s32 3, %s252
        %p254 = scmp.lt.s32.totalorder %s253, 2
        %s255 = scalar_select %p254, %s253, 2
        %s256 = smul.u32 8, %s255
        %s257 = smul.u32 2, %s18
        %s258 = ssub.s32 3, %s257
        %p259 = scmp.lt.s32.totalorder %s258, 2
        %s260 = scalar_select %p259, %s258, 2
        %s261 = smul.u32 8, %s260
        %v262 = vld [vmem:[%s237] sm:$0xf]
        %v263 = vld [vmem:[%s237 + $0x4] sm:$0xf]
        %v264 = vld [vmem:[%s1] sm:$0xf]
        %v265 = vld [vmem:[%s1 + $0x4] sm:$0xf]
        %v266 = vld [vmem:[%s1 + $0x8] sm:$0xf]
        %v267 = vld [vmem:[%s1 + $0xc] sm:$0xf]
        %v268 = vld [vmem:[%s1 + $0x10] sm:$0xf]
        %v269 = vld [vmem:[%s1 + $0x14] sm:$0xf]
        %v270 = vld [vmem:[%s1 + $0x18] sm:$0xf]
        %v271 = vld [vmem:[%s1 + $0x1c] sm:$0xf]
        %v272 = vld [vmem:[%s1 + $0x20] sm:$0xf]
        %v273 = vld [vmem:[%s1 + $0x24] sm:$0xf]
        %v274 = vld [vmem:[%s1 + $0x28] sm:$0xf]
        %v275 = vld [vmem:[%s1 + $0x2c] sm:$0xf]
        %v276 = vld [vmem:[%s1 + $0x30] sm:$0xf]
        %v277 = vld [vmem:[%s1 + $0x34] sm:$0xf]
        %v278 = vld [vmem:[%s1 + $0x38] sm:$0xf]
        %v279 = vld [vmem:[%s1 + $0x3c] sm:$0xf]
        %v280 = vld [vmem:[%s251] sm:$0xff]
        %v281 = vld [vmem:[%s251 + $0x8] sm:$0xff]
        %v284 = vunpack.c.l.b16 %v262
        %v285 = vunpack.c.l.b16 %v263
        %v286 = vpack.c.b16 %v285, %v284
        %v304 = vunpack.c.l.b16 %v264
        %v305 = vunpack.c.l.b16 %v265
        %v306 = vunpack.c.l.b16 %v266
        %v307 = vunpack.c.l.b16 %v267
        %v308 = vunpack.c.l.b16 %v268
        %v309 = vunpack.c.l.b16 %v269
        %v310 = vunpack.c.l.b16 %v270
        %v311 = vunpack.c.l.b16 %v271
        %v312 = vunpack.c.l.b16 %v272
        %v313 = vunpack.c.l.b16 %v273
        %v314 = vunpack.c.l.b16 %v274
        %v315 = vunpack.c.l.b16 %v275
        %v316 = vunpack.c.l.b16 %v276
        %v317 = vunpack.c.l.b16 %v277
        %v318 = vunpack.c.l.b16 %v278
        %v319 = vunpack.c.l.b16 %v279
        %v320 = vpack.c.b16 %v305, %v304
        %v321 = vpack.c.b16 %v307, %v306
        %v322 = vpack.c.b16 %v309, %v308
        %v323 = vpack.c.b16 %v311, %v310
        %v324 = vpack.c.b16 %v313, %v312
        %v325 = vpack.c.b16 %v315, %v314
        %v326 = vpack.c.b16 %v317, %v316
        %v327 = vpack.c.b16 %v319, %v318
        %336 = vmatpush.bf16.msra.mxu0 %v327
        %337 = vmatpush.bf16.msra.mxu0 %v326
        %338 = vmatpush.bf16.msra.mxu0 %v325
        %339 = vmatpush.bf16.msra.mxu0 %v324
        %340 = vmatpush.bf16.msra.mxu0 %v323
        %341 = vmatpush.bf16.msra.mxu0 %v322
        %342 = vmatpush.bf16.msra.mxu0 %v321
        %343 = vmatpush.bf16.msra.mxu0 %v320
        %344 = vmatmul.bf16.gmra.mxu0 %v286
        %v345 = vpop.f32.mrf.mxu0
        %v346 = vadd.f32 %v280, %v345
        %v347 = vpop.f32.mrf.mxu0
        %v348 = vadd.f32 %v281, %v347
        %349 = vdwg.mxu0
        %vm350 = vcmask 261120
        %351 = vst.msk [vmem:[%s224] sm:$0xff] %vm350, %v346
        %352 = vst.msk [vmem:[%s224 + $0x8] sm:$0xff] %vm350, %v348
        %s353 = sand.u32 %s111, 1
        %s354 = sand.u32 %s111, 1
        %s355 = smul.addr %s354, 16
        %s356 = scalar_lea.vmem [#allocation2], %s355
        // Predicated region
        $region33: #{tpu_custom_call.1} parent=31 // pred_check
          %p357 = pneg %p121
        $region34: #{tpu_custom_call.1} parent=31 // pred_check_branch
          %359 = sbr.rel (%p357) target = $region36
        $region35: #{tpu_custom_call.1} parent=31 // pred_region
          %s360 = smul.u32 2, %s18
          %s361 = ssub.s32 3, %s360
          %p362 = scmp.lt.s32.totalorder %s361, 2
          %s363 = scalar_select %p362, %s361, 2
          %s364 = smul.u32 8, %s363
          %p365 = scmp.ne.s32.totalorder 0, %s364
          %s366 = smul.addr %s19, 3
          %s367 = sadd.s32 %s360, %s366
          %s368 = smul.addr %s367, 8
          %s369 = scalar_lea.vmem %s3, %s368
          // Predicated region
          $region37: #{tpu_custom_call.1} parent=35 // pred_check
            %p370 = pneg %p365
          $region38: #{tpu_custom_call.1} parent=35 // pred_check_branch
            %372 = sbr.rel (%p370) target = $region40
          $region39: #{tpu_custom_call.1} parent=35 // pred_region
            // Predicated region
            $region41: #{tpu_custom_call.1} parent=39 // pred_check
              _
            $region42: #{tpu_custom_call.1} parent=39 // pred_check_branch
              %374 = sbr.rel (0) target = $region44
            $region43: #{tpu_custom_call.1} parent=39 // pred_region
              // Predicated region
              $region63: #{tpu_custom_call.1} parent=43 // pred_check
                _
              $region64: #{tpu_custom_call.1} parent=43 // pred_check_branch
                %426 = sbr.rel (0) target = $region66
              $region65: #{tpu_custom_call.1} parent=43 // pred_region
                %s427 = sshrl.u32 %s363, 1
                // While loop
                $region67: #{tpu_custom_call.1} parent=65 // loop_pre_header
                  _
                $region68: #{tpu_custom_call.1} parent=65 // loop_header
                  %s429 = sphi 0, %s431
                  %p430 = scmp.ge.s32.totalorder %s429, %s427
                  %s434 = sphi 0, %s443
                  %s435 = sphi %s356, %s446
                  %s436 = sphi %s369, %s447
                $region69: #{tpu_custom_call.1} parent=65 // loop_header_branch
                  %433 = sbr.rel (%p430) target = $region73
                $region70: #{tpu_custom_call.1} parent=65 // loop_body
                  %v437 = vld [vmem:[%s435] sm:$0xff]
                  %438 = vst [vmem:[%s436] sm:$0xff] %v437
                  %v439 = vld [vmem:[%s435 + $0x8] sm:$0xff]
                  %440 = vst [vmem:[%s436 + $0x8] sm:$0xff] %v439
                  %s441 = sadd.s32 1, %s434
                  %p442 = scmp.ge.s32.totalorder %s441, %s427
                  %s443 = scalar_select %p442, 0, %s441
                  %s444 = smul.u32 %s443, 16
                  %s445 = smul.u32 %s443, 16
                  %s446 = scalar_lea.vmem %s356, %s444 [#allocation2]
                  %s447 = scalar_lea.vmem %s369, %s445
                $region71: #{tpu_custom_call.1} parent=65 // loop_footer
                  %s431 = sadd.s32 %s429, 1
                $region72: #{tpu_custom_call.1} parent=65 // loop_footer_branch
                  %428 = sbr.rel target = $region68
                $region73: #{tpu_custom_call.1} parent=65 // loop_exit
                  _
                %s448 = sshrl.u32 %s363, 1
                %s449 = sand.u32 %s363, 1
                %s450 = smul.u32 %s448, 2
                %s451 = smul.u32 8, %s450
                %s452 = scalar_lea.vmem %s356, %s451 [#allocation2]
                %s453 = smul.u32 8, %s450
                %s454 = scalar_lea.vmem %s369, %s453
                // While loop
                $region74: #{tpu_custom_call.1} parent=65 // loop_pre_header
                  _
                $region75: #{tpu_custom_call.1} parent=65 // loop_header
                  %s456 = sphi 0, %s458
                  %p457 = scmp.ge.s32.totalorder %s456, %s449
                  %s461 = sphi 0, %s468
                  %s462 = sphi %s452, %s471
                  %s463 = sphi %s454, %s472
                $region76: #{tpu_custom_call.1} parent=65 // loop_header_branch
                  %460 = sbr.rel (%p457) target = $region80
                $region77: #{tpu_custom_call.1} parent=65 // loop_body
                  %v464 = vld [vmem:[%s462] sm:$0xff]
                  %465 = vst [vmem:[%s463] sm:$0xff] %v464
                  %s466 = sadd.s32 1, %s461
                  %p467 = scmp.ge.s32.totalorder %s466, %s449
                  %s468 = scalar_select %p467, 0, %s466
                  %s469 = smul.u32 %s468, 8
                  %s470 = smul.u32 %s468, 8
                  %s471 = scalar_lea.vmem %s452, %s469 [#allocation2]
                  %s472 = scalar_lea.vmem %s454, %s470
                $region78: #{tpu_custom_call.1} parent=65 // loop_footer
                  %s458 = sadd.s32 %s456, 1
                $region79: #{tpu_custom_call.1} parent=65 // loop_footer_branch
                  %455 = sbr.rel target = $region75
                $region80: #{tpu_custom_call.1} parent=65 // loop_exit
                  _
              $region66: #{tpu_custom_call.1} parent=43 // pred_fallthru
                _
              // Predicated region
              $region81: #{tpu_custom_call.1} parent=43 // pred_check
                _
              $region82: #{tpu_custom_call.1} parent=43 // pred_check_branch
                %474 = sbr.rel target = $region84
              $region83: #{tpu_custom_call.1} parent=43 // pred_region
                _
              $region84: #{tpu_custom_call.1} parent=43 // pred_fallthru
                _
            $region44: #{tpu_custom_call.1} parent=39 // pred_fallthru
              _
            // Predicated region
            $region45: #{tpu_custom_call.1} parent=39 // pred_check
              _
            $region46: #{tpu_custom_call.1} parent=39 // pred_check_branch
              %376 = sbr.rel target = $region48
            $region47: #{tpu_custom_call.1} parent=39 // pred_region
              %s378 = ssub.s32 256, 1
              %s379 = sshrl.u32 %s363, 1
              // While loop
              $region49: #{tpu_custom_call.1} parent=47 // loop_pre_header
                _
              $region50: #{tpu_custom_call.1} parent=47 // loop_header
                %s381 = sphi 0, %s383
                %p382 = scmp.ge.s32.totalorder %s381, %s379
                %s386 = sphi 0, %s395
                %s387 = sphi %s356, %s398
                %s388 = sphi %s369, %s399
              $region51: #{tpu_custom_call.1} parent=47 // loop_header_branch
                %385 = sbr.rel (%p382) target = $region55
              $region52: #{tpu_custom_call.1} parent=47 // loop_body
                %v389 = vld [vmem:[%s387] sm:%s378]
                %390 = vst [vmem:[%s388] sm:%s378] %v389
                %v391 = vld [vmem:[%s387 + $0x8] sm:%s378]
                %392 = vst [vmem:[%s388 + $0x8] sm:%s378] %v391
                %s393 = sadd.s32 1, %s386
                %p394 = scmp.ge.s32.totalorder %s393, %s379
                %s395 = scalar_select %p394, 0, %s393
                %s396 = smul.u32 %s395, 16
                %s397 = smul.u32 %s395, 16
                %s398 = scalar_lea.vmem %s356, %s396 [#allocation2]
                %s399 = scalar_lea.vmem %s369, %s397
              $region53: #{tpu_custom_call.1} parent=47 // loop_footer
                %s383 = sadd.s32 %s381, 1
              $region54: #{tpu_custom_call.1} parent=47 // loop_footer_branch
                %380 = sbr.rel target = $region50
              $region55: #{tpu_custom_call.1} parent=47 // loop_exit
                _
              %s400 = sshrl.u32 %s363, 1
              %s401 = sand.u32 %s363, 1
              %s402 = smul.u32 %s400, 2
              %s403 = smul.u32 8, %s402
              %s404 = scalar_lea.vmem %s356, %s403 [#allocation2]
              %s405 = smul.u32 8, %s402
              %s406 = scalar_lea.vmem %s369, %s405
              // While loop
              $region56: #{tpu_custom_call.1} parent=47 // loop_pre_header
                _
              $region57: #{tpu_custom_call.1} parent=47 // loop_header
                %s408 = sphi 0, %s410
                %p409 = scmp.ge.s32.totalorder %s408, %s401
                %s413 = sphi 0, %s420
                %s414 = sphi %s404, %s423
                %s415 = sphi %s406, %s424
              $region58: #{tpu_custom_call.1} parent=47 // loop_header_branch
                %412 = sbr.rel (%p409) target = $region62
              $region59: #{tpu_custom_call.1} parent=47 // loop_body
                %v416 = vld [vmem:[%s414] sm:%s378]
                %417 = vst [vmem:[%s415] sm:%s378] %v416
                %s418 = sadd.s32 1, %s413
                %p419 = scmp.ge.s32.totalorder %s418, %s401
                %s420 = scalar_select %p419, 0, %s418
                %s421 = smul.u32 %s420, 8
                %s422 = smul.u32 %s420, 8
                %s423 = scalar_lea.vmem %s404, %s421 [#allocation2]
                %s424 = scalar_lea.vmem %s406, %s422
              $region60: #{tpu_custom_call.1} parent=47 // loop_footer
                %s410 = sadd.s32 %s408, 1
              $region61: #{tpu_custom_call.1} parent=47 // loop_footer_branch
                %407 = sbr.rel target = $region57
              $region62: #{tpu_custom_call.1} parent=47 // loop_exit
                _
            $region48: #{tpu_custom_call.1} parent=39 // pred_fallthru
              _
          $region40: #{tpu_custom_call.1} parent=35 // pred_fallthru
            _
          %475 = vnop
        $region36: #{tpu_custom_call.1} parent=31 // pred_fallthru
          _
      $region32: #{tpu_custom_call.1} parent=5 // pred_fallthru
        _
      %p476 = scmp.le.s32.totalorder 2, %s9
      // Predicated region
      $region85: #{tpu_custom_call.1} parent=5 // pred_check
        %p477 = pneg %p476
      $region86: #{tpu_custom_call.1} parent=5 // pred_check_branch
        %479 = sbr.rel (%p477) target = $region88
      $region87: #{tpu_custom_call.1} parent=5 // pred_region
        %s480 = ssub.s32 %s9, 2
        // Predicated region
        $region89: #{tpu_custom_call.1} parent=87 // pred_check
          %p481 = pneg %p127
        $region90: #{tpu_custom_call.1} parent=87 // pred_check_branch
          %483 = sbr.rel (%p481) target = $region92
        $region91: #{tpu_custom_call.1} parent=87 // pred_region
          %s484 = sand.u32 %s112, 1
          %s485 = sand.u32 %s112, 1
          %s486 = smul.addr %s485, 16
          %s487 = scalar_lea.vmem [#allocation2], %s486
        $region92: #{tpu_custom_call.1} parent=87 // pred_fallthru
          _
      $region88: #{tpu_custom_call.1} parent=5 // pred_fallthru
        _
    $region6: #{tpu_custom_call.1} parent=1 // loop_footer
      %s13 = sadd.s32 1, %s9
    $region7: #{tpu_custom_call.1} parent=1 // loop_footer_branch
      %8 = sbr.rel target = $region3
    $region8: #{tpu_custom_call.1} parent=1 // loop_exit
      _

</llo_original>
